<compile_context>
chip_gen: v6e
topology: v6e:2x2x1
jax: 0.10.0
libtpu: 0.0.40
codegen_flags: <defaults>
</compile_context>

<pallas_src>
import functools

import jax
import jax.numpy as jnp
from jax.experimental import pallas as pl
from jax.experimental.pallas import tpu as pltpu


def _round_up(x, m):
    return (x + m - 1) // m * m


def classblock_kernel(x_ref, w1_ref, shift_ref, w2_ref, b2_ref, out_ref):
    # x_ref:     (TM, C_in)   f32 input tile (conv input, spatial squeezed)
    # w1_ref:    (C_in, B)    bf16 1x1-conv weight with BN scale folded in
    # shift_ref: (1, B)       f32 folded BN shift = beta - mean * scale
    # w2_ref:    (B, Cpad)    bf16 classifier weight (padded, transposed)
    # b2_ref:    (1, Cpad)    f32 classifier bias (padded)
    # out_ref:   (TM, Cpad)   f32 logits tile

    # Cast x to bf16 in-kernel (cheap VPU op) -> 1x1 conv (+ folded BN scale)
    # == bf16 matmul with f32 accumulation                              -> MXU
    h = jnp.dot(x_ref[...].astype(jnp.bfloat16), w1_ref[...],
                preferred_element_type=jnp.float32)

    # BN shift + ReLU in f32                                            -> VPU
    h = jnp.maximum(h + shift_ref[...], 0.0)

    # Linear classifier, bf16 operands, f32 accumulation                -> MXU
    y = jnp.dot(h.astype(jnp.bfloat16), w2_ref[...],
                preferred_element_type=jnp.float32)
    out_ref[...] = (y + b2_ref[...]).astype(out_ref.dtype)


def fold_params(conv_w, bn_gamma, bn_beta, bn_mean, bn_var, lin_w, lin_b,
                eps=1e-5):
    """One-time parameter prep (hoisted out of the forward path).

    Folds eval-mode BN into the conv weight / shift, transposes weights into
    matmul layout, casts matmul operands to bf16, and zero-pads the classifier
    dimension up to a multiple of 128 for lane-dense output stores.
    """
    B, C_in = conv_w.shape[0], conv_w.shape[1]
    class_num = lin_w.shape[0]
    c_pad = _round_up(class_num, 128)

    scale = bn_gamma / jnp.sqrt(bn_var + eps)                     # (B,)
    shift = (bn_beta - bn_mean * scale).reshape(1, B).astype(jnp.float32)

    # Conv weight -> (C_in, B) with BN scale folded into columns, bf16.
    w1 = (conv_w.reshape(B, C_in).T * scale[None, :]).astype(jnp.bfloat16)

    # Classifier weight -> (B, Cpad), zero-padded, bf16; bias padded, f32.
    w2 = jnp.zeros((B, c_pad), jnp.bfloat16)
    w2 = w2.at[:, :class_num].set(lin_w.T.astype(jnp.bfloat16))
    b2 = jnp.zeros((1, c_pad), jnp.float32)
    b2 = b2.at[:, :class_num].set(lin_b.astype(jnp.float32))

    return w1, shift, w2, b2, class_num


def _choose_tm(n):
    """Batch tile: large (<=512, multiple of 16) to amortize per-step overhead
    and fill the MXU, but split so the parallel axis has >=2 steps when the
    batch allows it (megacore sharding on v7x)."""
    tm = max(16, min(512, _round_up(n, 16)))
    if tm >= n:
        # Single-tile batch: shrink to the batch itself (tiny batches) or split
        # into two tiles so both TensorCores get work.
        if n > 16:
            tm = max(16, _round_up(pl.cdiv(n, 2), 16))
        else:
            tm = max(8, _round_up(n, 8))
    return tm


def class_block_forward(x_nchw, folded_params):
    """x_nchw: (N, C_in, 1, 1).  Returns (N, class_num) float32 logits."""
    w1, shift, w2, b2, class_num = folded_params
    N, C_in, H, W = x_nchw.shape
    assert H == 1 and W == 1, "ClassBlock expects pooled (N, C, 1, 1) input"
    B = w1.shape[1]
    c_pad = w2.shape[1]

    # Squeeze spatial dims only (pure metadata); keep f32 — the bf16 cast
    # happens in-kernel so x is read from HBM exactly once.
    x2 = x_nchw.reshape(N, C_in)

    TM = _choose_tm(N)
    grid = (pl.cdiv(N, TM),)

    flops = 2 * N * C_in * B + 2 * N * B * c_pad
    bytes_accessed = (N * C_in * 4 + C_in * B * 2 + B * c_pad * 2
                      + B * 4 + c_pad * 4 + N * c_pad * 4)

    # NOTE: the four weight specs are constant-index and could be single-
    # buffered (pipeline_mode=pl.Buffered(1)) to halve their resident VMEM on
    # v7x; left at the default here since they are small for PCB-sized models.
    out = pl.pallas_call(
        classblock_kernel,
        out_shape=jax.ShapeDtypeStruct((N, c_pad), jnp.float32),
        grid=grid,
        in_specs=[
            pl.BlockSpec((TM, C_in), lambda i: (i, 0)),    # x tile, streamed
            pl.BlockSpec((C_in, B), lambda i: (0, 0)),     # w1, resident
            pl.BlockSpec((1, B), lambda i: (0, 0)),        # shift, resident
            pl.BlockSpec((B, c_pad), lambda i: (0, 0)),    # w2, resident
            pl.BlockSpec((1, c_pad), lambda i: (0, 0)),    # b2, resident
        ],
        out_specs=pl.BlockSpec((TM, c_pad), lambda i: (i, 0)),
        compiler_params=pltpu.CompilerParams(
            dimension_semantics=("parallel",),
        ),
        cost_estimate=pl.CostEstimate(
            flops=flops, transcendentals=0, bytes_accessed=bytes_accessed),
    )(x2, w1, shift, w2, b2)

    # Strip padded classifier columns.
    return out[:, :class_num]


def init_params(key, input_dim, class_num, num_bottleneck):
    """Deterministic parameter init mirroring weights_init_kaiming / _classifier."""
    k_conv, k_lin = jax.random.split(key, 2)

    # Conv2d: kaiming_normal_, mode='fan_out', relu -> std = sqrt(2 / fan_out),
    # fan_out = out_channels * kh * kw = num_bottleneck
    conv_std = (2.0 / num_bottleneck) ** 0.5
    conv_w = conv_std * jax.random.normal(
        k_conv, (num_bottleneck, input_dim, 1, 1), dtype=jnp.float32)

    # BatchNorm2d: weight=1, bias=0; fresh running stats mean=0, var=1.
    bn_gamma = jnp.ones((num_bottleneck,), jnp.float32)
    bn_beta = jnp.zeros((num_bottleneck,), jnp.float32)
    bn_mean = jnp.zeros((num_bottleneck,), jnp.float32)
    bn_var = jnp.ones((num_bottleneck,), jnp.float32)

    # Linear classifier: weight ~ N(0, 0.001), bias = 0.
    lin_w = 0.001 * jax.random.normal(
        k_lin, (class_num, num_bottleneck), dtype=jnp.float32)
    lin_b = jnp.zeros((class_num,), jnp.float32)

    return conv_w, bn_gamma, bn_beta, bn_mean, bn_var, lin_w, lin_b


def reference_forward(x_nchw, conv_w, bn_gamma, bn_beta, bn_mean, bn_var,
                      lin_w, lin_b, eps=1e-5):
    """Pure-JAX f32 reference (same math as the PyTorch module, eval-mode BN)."""
    N, C_in, _, _ = x_nchw.shape
    B = conv_w.shape[0]
    x2 = x_nchw.reshape(N, C_in)
    h = x2 @ conv_w.reshape(B, C_in).T
    h = (h - bn_mean) / jnp.sqrt(bn_var + eps) * bn_gamma + bn_beta
    h = jnp.maximum(h, 0.0)
    return h @ lin_w.T + lin_b


if __name__ == "__main__":
    # Small shapes consistent with the module (pooled per-part feature input).
    N, C_in, num_bottleneck, class_num = 8, 64, 128, 32

    key = jax.random.PRNGKey(0)
    k_x, k_p = jax.random.split(key)
    x = jax.random.normal(k_x, (N, C_in, 1, 1), dtype=jnp.float32)
    params = init_params(k_p, C_in, class_num, num_bottleneck)

    # One-time parameter folding (hoisted out of the forward path).
    folded = fold_params(*params)

    fwd = jax.jit(functools.partial(class_block_forward, folded_params=folded))
    out = jax.block_until_ready(fwd(x))

    ref = reference_forward(x, *params)
    assert out.shape == (N, class_num), out.shape
    # bf16 matmul operands (f32 accumulation) -> loosened tolerance vs f32 ref.
    assert jnp.allclose(out, ref, atol=2e-3, rtol=2e-2), (
        "mismatch vs reference: max abs err = "
        f"{float(jnp.max(jnp.abs(out - ref)))}")

    print("KERNEL_OK")
</pallas_src>

<mosaic_0001>
module attributes {stable_mosaic.version = 11 : i64} {
  func.func @classblock_kernel(%arg0: i32, %arg1: memref<8x64xf32, #tpu.memory_space<vmem>>, %arg2: memref<64x128xbf16, #tpu.memory_space<vmem>>, %arg3: memref<1x128xf32, #tpu.memory_space<vmem>>, %arg4: memref<128x128xbf16, #tpu.memory_space<vmem>>, %arg5: memref<1x128xf32, #tpu.memory_space<vmem>>, %arg6: memref<8x128xf32, #tpu.memory_space<vmem>>) attributes {dimension_semantics = [#tpu.dimension_semantics<parallel>], iteration_bounds = array<i64: 1>, scalar_prefetch = 0 : i64, scratch_operands = 0 : i64, tpu.core_type = #tpu.core_type<tc>, window_params = [{transform_indices = @transform_0, window_bounds = array<i64: 8, 64>}, {pipeline_mode = #tpu.pipeline_mode<synchronous>, transform_indices = @transform_1, window_bounds = array<i64: 64, 128>}, {pipeline_mode = #tpu.pipeline_mode<synchronous>, transform_indices = @transform_2, window_bounds = array<i64: 1, 128>}, {pipeline_mode = #tpu.pipeline_mode<synchronous>, transform_indices = @transform_3, window_bounds = array<i64: 128, 128>}, {pipeline_mode = #tpu.pipeline_mode<synchronous>, transform_indices = @transform_4, window_bounds = array<i64: 1, 128>}, {transform_indices = @transform_5, window_bounds = array<i64: 8, 128>}]} {
    %c0 = arith.constant 0 : index
    %c0_0 = arith.constant 0 : index
    %0 = vector.load %arg1[%c0, %c0_0] : memref<8x64xf32, #tpu.memory_space<vmem>>, vector<8x64xf32>
    %1 = arith.truncf %0 : vector<8x64xf32> to vector<8x64xbf16>
    %c0_1 = arith.constant 0 : index
    %c0_2 = arith.constant 0 : index
    %2 = vector.load %arg2[%c0_1, %c0_2] : memref<64x128xbf16, #tpu.memory_space<vmem>>, vector<64x128xbf16>
    %cst = arith.constant dense<0.000000e+00> : vector<8x128xf32>
    %3 = tpu.matmul %1, %2, %cst {dimension_numbers = #tpu.dot_dimension_numbers<[1], [0], [0], [1], [0, 0, 1, 1], [], []>} : vector<8x64xbf16>, vector<64x128xbf16>, vector<8x128xf32> -> vector<8x128xf32>
    %c0_3 = arith.constant 0 : index
    %c0_4 = arith.constant 0 : index
    %4 = vector.load %arg3[%c0_3, %c0_4] : memref<1x128xf32, #tpu.memory_space<vmem>>, vector<1x128xf32>
    %5 = vector.broadcast %4 : vector<1x128xf32> to vector<8x128xf32>
    %6 = arith.addf %3, %5 : vector<8x128xf32>
    %cst_5 = arith.constant 0.000000e+00 : f32
    %7 = vector.broadcast %cst_5 : f32 to vector<8x128xf32>
    %8 = arith.maximumf %6, %7 : vector<8x128xf32>
    %9 = arith.truncf %8 : vector<8x128xf32> to vector<8x128xbf16>
    %c0_6 = arith.constant 0 : index
    %c0_7 = arith.constant 0 : index
    %10 = vector.load %arg4[%c0_6, %c0_7] : memref<128x128xbf16, #tpu.memory_space<vmem>>, vector<128x128xbf16>
    %cst_8 = arith.constant dense<0.000000e+00> : vector<8x128xf32>
    %11 = tpu.matmul %9, %10, %cst_8 {dimension_numbers = #tpu.dot_dimension_numbers<[1], [0], [0], [1], [0, 0, 1, 1], [], []>} : vector<8x128xbf16>, vector<128x128xbf16>, vector<8x128xf32> -> vector<8x128xf32>
    %c0_9 = arith.constant 0 : index
    %c0_10 = arith.constant 0 : index
    %12 = vector.load %arg5[%c0_9, %c0_10] : memref<1x128xf32, #tpu.memory_space<vmem>>, vector<1x128xf32>
    %13 = vector.broadcast %12 : vector<1x128xf32> to vector<8x128xf32>
    %14 = arith.addf %11, %13 : vector<8x128xf32>
    %c0_11 = arith.constant 0 : index
    %c0_12 = arith.constant 0 : index
    %15 = vector.load %arg6[%c0_11, %c0_12] : memref<8x128xf32, #tpu.memory_space<vmem>>, vector<8x128xf32>
    tpu.vector_store %arg6[%c0_11, %c0_12], %14 {strides = array<i32>} : memref<8x128xf32, #tpu.memory_space<vmem>>, vector<8x128xf32>,
    return
  }
  func.func @transform_0(%arg0: i32) -> (i32, i32) {
    %c0_i32 = arith.constant 0 : i32
    %c0_i32_0 = arith.constant 0 : i32
    return %arg0, %c0_i32 : i32, i32
  }
  func.func @transform_1(%arg0: i32) -> (i32, i32) {
    %c0_i32 = arith.constant 0 : i32
    %c0_i32_0 = arith.constant 0 : i32
    %c0_i32_1 = arith.constant 0 : i32
    return %c0_i32, %c0_i32_0 : i32, i32
  }
  func.func @transform_2(%arg0: i32) -> (i32, i32) {
    %c0_i32 = arith.constant 0 : i32
    %c0_i32_0 = arith.constant 0 : i32
    %c0_i32_1 = arith.constant 0 : i32
    return %c0_i32, %c0_i32_0 : i32, i32
  }
  func.func @transform_3(%arg0: i32) -> (i32, i32) {
    %c0_i32 = arith.constant 0 : i32
    %c0_i32_0 = arith.constant 0 : i32
    %c0_i32_1 = arith.constant 0 : i32
    return %c0_i32, %c0_i32_0 : i32, i32
  }
  func.func @transform_4(%arg0: i32) -> (i32, i32) {
    %c0_i32 = arith.constant 0 : i32
    %c0_i32_0 = arith.constant 0 : i32
    %c0_i32_1 = arith.constant 0 : i32
    return %c0_i32, %c0_i32_0 : i32, i32
  }
  func.func @transform_5(%arg0: i32) -> (i32, i32) {
    %c0_i32 = arith.constant 0 : i32
    %c0_i32_0 = arith.constant 0 : i32
    return %arg0, %c0_i32 : i32, i32
  }
}

</mosaic_0001>

<llo_original>
// kernel: class_block_forward.1
$region0: #{class_block_forward.1}
  #allocation0 [shape = 'u32[]', space=smem, size = 0x4, offset = 0x4, fixed_abs, tag = 'smem constant byte address 0x4 - core index']
  #allocation1 [shape = 'u32[144,128]{1,0:T(1,128)}', space=vmem, size = 0x12000, scoped, tag = 'internal scratch']
  %s0 = inlined_call_operand.hbm [shape: f32[8,64], index: 0, kind: input, shape index: {}]
  %s1 = inlined_call_operand.hbm [shape: bf16[64,128], index: 1, kind: input, shape index: {}]
  %s2 = inlined_call_operand.vmem [shape: f32[1,128], index: 2, kind: input, shape index: {}, may-alias: {2,4}]
  %s3 = inlined_call_operand.hbm [shape: bf16[128,128], index: 3, kind: input, shape index: {}]
  %s4 = inlined_call_operand.vmem [shape: f32[1,128], index: 4, kind: input, shape index: {}, may-alias: {2,4}]
  %s5 = inlined_call_operand.hbm [shape: f32[8,128], index: 5, kind: output, shape index: {}]
  %s6 = sld [smem:[#allocation0]]
  $region42: #{class_block_forward.1} parent=0
    _
  %s8 = ssub.s32 1, %s6
  %s9 = scalar_select 0, %s8, %s6
  $region1: #{class_block_forward.1} parent=0
    #allocation2 [shape = 'u8[4096]{0}', space=vmem, size = 0x1000, scoped, tag = 'input window, operand 0, single buffered']
    #allocation3 [shape = 's32[1]{0}', space=sflag, size = 0x4, scoped, tag = 'scoped memory for class_block_forward.1']
    #allocation4 [shape = 's32[1]{0}', space=sflag, size = 0x4, scoped, tag = 'scoped memory for class_block_forward.1']
    #allocation5 [shape = 'u8[16384]{0}', space=vmem, size = 0x4000, scoped, tag = 'input window, operand 1, single buffered']
    #allocation6 [shape = 's32[1]{0}', space=sflag, size = 0x4, scoped, tag = 'scoped memory for class_block_forward.1']
    #allocation7 [shape = 'u8[32768]{0}', space=vmem, size = 0x8000, scoped, tag = 'input window, operand 3, single buffered']
    #allocation8 [shape = 'u8[4096]{0}', space=vmem, size = 0x1000, scoped, tag = 'output window, operand 0, single buffered']
    %10 = vsyncpa [#allocation3], 0
    %11 = vsyncpa [#allocation6], 0
    %12 = vsyncpa [#allocation4], 0
    // Predicated region
    $region2: #{class_block_forward.1} parent=1 // pred_check
      _
    $region3: #{class_block_forward.1} parent=1 // pred_check_branch
      %14 = sbr.rel (0) target = $region5
    $region4: #{class_block_forward.1} parent=1 // pred_region
      %s16 = ssub.s32 128, 128
      %17 = vsyncadd [#allocation3], %s16
      %s19 = sshll.u32 [#allocation2], 4
      %s20 = int_to_ptr.vmem [resolvable:$true] %s19
      %22 = dma.hbm_to_vmem [thread:$0]  %s0, 128, %s20, [#allocation3]
    $region5: #{class_block_forward.1} parent=1 // pred_fallthru
      _
    // Predicated region
    $region6: #{class_block_forward.1} parent=1 // pred_check
      _
    $region7: #{class_block_forward.1} parent=1 // pred_check_branch
      %24 = sbr.rel (0) target = $region9
    $region8: #{class_block_forward.1} parent=1 // pred_region
      %s26 = ssub.s32 512, 512
      %27 = vsyncadd [#allocation6], %s26
      %s28 = sshll.u32 [#allocation5], 4
      %s29 = int_to_ptr.vmem [resolvable:$true] %s28
      %34 = dma.hbm_to_vmem [thread:$0]  %s1, 512, %s29, [#allocation6], 64, 64, 4
    $region9: #{class_block_forward.1} parent=1 // pred_fallthru
      _
    // Predicated region
    $region10: #{class_block_forward.1} parent=1 // pred_check
      _
    $region11: #{class_block_forward.1} parent=1 // pred_check_branch
      %36 = sbr.rel (0) target = $region13
    $region12: #{class_block_forward.1} parent=1 // pred_region
      _
    $region13: #{class_block_forward.1} parent=1 // pred_fallthru
      _
    // Predicated region
    $region14: #{class_block_forward.1} parent=1 // pred_check
      _
    $region15: #{class_block_forward.1} parent=1 // pred_check_branch
      %38 = sbr.rel (0) target = $region17
    $region16: #{class_block_forward.1} parent=1 // pred_region
      %s40 = ssub.s32 1024, 1024
      %41 = vsyncadd [#allocation6], %s40
      %s42 = sshll.u32 [#allocation7], 4
      %s43 = int_to_ptr.vmem [resolvable:$true] %s42
      %48 = dma.hbm_to_vmem [thread:$0]  %s3, 1024, %s43, [#allocation6], 64, 64, 4
    $region17: #{class_block_forward.1} parent=1 // pred_fallthru
      _
    // Predicated region
    $region18: #{class_block_forward.1} parent=1 // pred_check
      _
    $region19: #{class_block_forward.1} parent=1 // pred_check_branch
      %50 = sbr.rel (0) target = $region21
    $region20: #{class_block_forward.1} parent=1 // pred_region
      _
    $region21: #{class_block_forward.1} parent=1 // pred_fallthru
      _
    // Predicated region
    $region22: #{class_block_forward.1} parent=1 // pred_check
      _
    $region23: #{class_block_forward.1} parent=1 // pred_check_branch
      %52 = sbr.rel (0) target = $region25
    $region24: #{class_block_forward.1} parent=1 // pred_region
      %53 = dma.done [#allocation3], 128
    $region25: #{class_block_forward.1} parent=1 // pred_fallthru
      _
    // Predicated region
    $region26: #{class_block_forward.1} parent=1 // pred_check
      _
    $region27: #{class_block_forward.1} parent=1 // pred_check_branch
      %55 = sbr.rel (0) target = $region29
    $region28: #{class_block_forward.1} parent=1 // pred_region
      %56 = dma.done [#allocation6], 512
    $region29: #{class_block_forward.1} parent=1 // pred_fallthru
      _
    // Predicated region
    $region30: #{class_block_forward.1} parent=1 // pred_check
      _
    $region31: #{class_block_forward.1} parent=1 // pred_check_branch
      %58 = sbr.rel (0) target = $region33
    $region32: #{class_block_forward.1} parent=1 // pred_region
      %59 = dma.done [#allocation6], 1024
    $region33: #{class_block_forward.1} parent=1 // pred_fallthru
      _
    %v61 = vld [vmem:[#allocation2] sm:$0xff]
    %v62 = vpack.c.bf16 %v61, %v61
    %v63 = vld [vmem:[#allocation5] sm:$0xf]
    %v64 = vld [vmem:[#allocation5 + $0x4] sm:$0xf]
    %v65 = vld [vmem:[#allocation5 + $0x8] sm:$0xf]
    %v66 = vld [vmem:[#allocation5 + $0xc] sm:$0xf]
    %v67 = vld [vmem:[#allocation5 + $0x10] sm:$0xf]
    %v68 = vld [vmem:[#allocation5 + $0x14] sm:$0xf]
    %v69 = vld [vmem:[#allocation5 + $0x18] sm:$0xf]
    %v70 = vld [vmem:[#allocation5 + $0x1c] sm:$0xf]
    %v71 = vld [vmem:[%s2] sm:$0x1]
    %v73 = vlaneseq
    %v74 = vshrl.u32 %v73, 7
    %v75 = vsub.s32 0, %v74
    %v76 = vrot.slane %v71, %v75
    %v86 = vunpack.c.l.b16 %v63
    %v87 = vunpack.c.l.b16 %v64
    %v88 = vunpack.c.l.b16 %v65
    %v89 = vunpack.c.l.b16 %v66
    %v90 = vunpack.c.l.b16 %v67
    %v91 = vunpack.c.l.b16 %v68
    %v92 = vunpack.c.l.b16 %v69
    %v93 = vunpack.c.l.b16 %v70
    %v94 = vpack.c.b16 %v87, %v86
    %v95 = vpack.c.b16 %v89, %v88
    %v96 = vpack.c.b16 %v91, %v90
    %v97 = vpack.c.b16 %v93, %v92
    %vm102 = vcmask 523264
    %v104 = vsel %vm102, %v62, 0
    %106 = vmatprep.subr.bf16.mxu0 0
    %107 = vmatpush1.bf16.msra.mxu0 0
    %108 = vmatprep.subr.bf16.mxu0 0
    %109 = vmatpush1.bf16.msra.mxu0 0
    %110 = vmatprep.subr.bf16.mxu0 0
    %111 = vmatpush1.bf16.msra.mxu0 0
    %112 = vmatprep.subr.bf16.mxu0 0
    %113 = vmatpush1.bf16.msra.mxu0 0
    %114 = vmatprep.subr.bf16.mxu0 0
    %115 = vmatpush1.bf16.msra.mxu0 %v97
    %116 = vmatprep.subr.bf16.mxu0 0
    %117 = vmatpush1.bf16.msra.mxu0 %v96
    %118 = vmatprep.subr.bf16.mxu0 0
    %119 = vmatpush1.bf16.msra.mxu0 %v95
    %120 = vmatprep.subr.bf16.mxu0 0
    %121 = vmatpush1.bf16.msra.mxu0 %v94
    %122 = vmatprep.subr.bf16.mxu0 0
    %123 = vmatpush2.bf16.msra.mxu0 0
    %124 = vmatprep.subr.bf16.mxu0 0
    %125 = vmatpush2.bf16.msra.mxu0 0
    %126 = vmatprep.subr.bf16.mxu0 0
    %127 = vmatpush2.bf16.msra.mxu0 0
    %128 = vmatprep.subr.bf16.mxu0 0
    %129 = vmatpush2.bf16.msra.mxu0 0
    %130 = vmatprep.subr.bf16.mxu0 0
    %131 = vmatpush2.bf16.msra.mxu0 0
    %132 = vmatprep.subr.bf16.mxu0 0
    %133 = vmatpush2.bf16.msra.mxu0 0
    %134 = vmatprep.subr.bf16.mxu0 0
    %135 = vmatpush2.bf16.msra.mxu0 0
    %136 = vmatprep.subr.bf16.mxu0 0
    %137 = vmatpush2.bf16.msra.mxu0 0
    %138 = vmatprep.mubr.bf16.mxu0 0
    %139 = vmatmul.mubr.bf16.gmra.mxu0 %v104
    %v140 = vpop.f32.mrf.mxu0
    %v141 = vadd.f32 %v76, %v140
    %v142 = vpop.f32.mrf.mxu0
    %v143 = vpop.f32.mrf.mxu0
    %v144 = vpop.f32.mrf.mxu0
    %145 = vdwg.mxu0
    %v146 = vmax.f32 %v141, 0.0
    %v147 = vpack.c.bf16 %v146, %v146
    %v148 = vld [vmem:[#allocation7] sm:$0xf]
    %v149 = vld [vmem:[#allocation7 + $0x4] sm:$0xf]
    %v150 = vld [vmem:[#allocation7 + $0x8] sm:$0xf]
    %v151 = vld [vmem:[#allocation7 + $0xc] sm:$0xf]
    %v152 = vld [vmem:[#allocation7 + $0x10] sm:$0xf]
    %v153 = vld [vmem:[#allocation7 + $0x14] sm:$0xf]
    %v154 = vld [vmem:[#allocation7 + $0x18] sm:$0xf]
    %v155 = vld [vmem:[#allocation7 + $0x1c] sm:$0xf]
    %v156 = vld [vmem:[#allocation7 + $0x20] sm:$0xf]
    %v157 = vld [vmem:[#allocation7 + $0x24] sm:$0xf]
    %v158 = vld [vmem:[#allocation7 + $0x28] sm:$0xf]
    %v159 = vld [vmem:[#allocation7 + $0x2c] sm:$0xf]
    %v160 = vld [vmem:[#allocation7 + $0x30] sm:$0xf]
    %v161 = vld [vmem:[#allocation7 + $0x34] sm:$0xf]
    %v162 = vld [vmem:[#allocation7 + $0x38] sm:$0xf]
    %v163 = vld [vmem:[#allocation7 + $0x3c] sm:$0xf]
    %v164 = vld [vmem:[%s4] sm:$0x1]
    %v166 = vlaneseq
    %v167 = vshrl.u32 %v166, 7
    %v168 = vsub.s32 0, %v167
    %v169 = vrot.slane %v164, %v168
    %v187 = vunpack.c.l.b16 %v148
    %v188 = vunpack.c.l.b16 %v149
    %v189 = vunpack.c.l.b16 %v150
    %v190 = vunpack.c.l.b16 %v151
    %v191 = vunpack.c.l.b16 %v152
    %v192 = vunpack.c.l.b16 %v153
    %v193 = vunpack.c.l.b16 %v154
    %v194 = vunpack.c.l.b16 %v155
    %v195 = vunpack.c.l.b16 %v156
    %v196 = vunpack.c.l.b16 %v157
    %v197 = vunpack.c.l.b16 %v158
    %v198 = vunpack.c.l.b16 %v159
    %v199 = vunpack.c.l.b16 %v160
    %v200 = vunpack.c.l.b16 %v161
    %v201 = vunpack.c.l.b16 %v162
    %v202 = vunpack.c.l.b16 %v163
    %v203 = vpack.c.b16 %v188, %v187
    %v204 = vpack.c.b16 %v190, %v189
    %v205 = vpack.c.b16 %v192, %v191
    %v206 = vpack.c.b16 %v194, %v193
    %v207 = vpack.c.b16 %v196, %v195
    %v208 = vpack.c.b16 %v198, %v197
    %v209 = vpack.c.b16 %v200, %v199
    %v210 = vpack.c.b16 %v202, %v201
    %219 = vmatprep.subr.bf16.mxu0 0
    %220 = vmatpush1.bf16.msra.mxu0 %v210
    %221 = vmatprep.subr.bf16.mxu0 0
    %222 = vmatpush1.bf16.msra.mxu0 %v209
    %223 = vmatprep.subr.bf16.mxu0 0
    %224 = vmatpush1.bf16.msra.mxu0 %v208
    %225 = vmatprep.subr.bf16.mxu0 0
    %226 = vmatpush1.bf16.msra.mxu0 %v207
    %227 = vmatprep.subr.bf16.mxu0 0
    %228 = vmatpush1.bf16.msra.mxu0 %v206
    %229 = vmatprep.subr.bf16.mxu0 0
    %230 = vmatpush1.bf16.msra.mxu0 %v205
    %231 = vmatprep.subr.bf16.mxu0 0
    %232 = vmatpush1.bf16.msra.mxu0 %v204
    %233 = vmatprep.subr.bf16.mxu0 0
    %234 = vmatpush1.bf16.msra.mxu0 %v203
    %235 = vmatprep.subr.bf16.mxu0 0
    %236 = vmatpush2.bf16.msra.mxu0 0
    %237 = vmatprep.subr.bf16.mxu0 0
    %238 = vmatpush2.bf16.msra.mxu0 0
    %239 = vmatprep.subr.bf16.mxu0 0
    %240 = vmatpush2.bf16.msra.mxu0 0
    %241 = vmatprep.subr.bf16.mxu0 0
    %242 = vmatpush2.bf16.msra.mxu0 0
    %243 = vmatprep.subr.bf16.mxu0 0
    %244 = vmatpush2.bf16.msra.mxu0 0
    %245 = vmatprep.subr.bf16.mxu0 0
    %246 = vmatpush2.bf16.msra.mxu0 0
    %247 = vmatprep.subr.bf16.mxu0 0
    %248 = vmatpush2.bf16.msra.mxu0 0
    %249 = vmatprep.subr.bf16.mxu0 0
    %250 = vmatpush2.bf16.msra.mxu0 0
    %251 = vmatprep.mubr.bf16.mxu0 0
    %252 = vmatmul.mubr.bf16.gmra.mxu0 %v147
    %v253 = vpop.f32.mrf.mxu0
    %v254 = vadd.f32 %v169, %v253
    %v255 = vpop.f32.mrf.mxu0
    %v256 = vpop.f32.mrf.mxu0
    %v257 = vpop.f32.mrf.mxu0
    %258 = vdwg.mxu0
    %259 = vst [vmem:[#allocation8] sm:$0xff] %v254
    // Predicated region
    $region34: #{class_block_forward.1} parent=1 // pred_check
      _
    $region35: #{class_block_forward.1} parent=1 // pred_check_branch
      %261 = sbr.rel (0) target = $region37
    $region36: #{class_block_forward.1} parent=1 // pred_region
      %s263 = ssub.s32 128, 128
      %264 = vsyncadd [#allocation4], %s263
      %s266 = sshll.u32 [#allocation8], 4
      %s267 = int_to_ptr.vmem [resolvable:$true] %s266
      %269 = dma.vmem_to_hbm [thread:$0]  %s267, 128, %s5, [#allocation4]
    $region37: #{class_block_forward.1} parent=1 // pred_fallthru
      _
    // Predicated region
    $region38: #{class_block_forward.1} parent=1 // pred_check
      _
    $region39: #{class_block_forward.1} parent=1 // pred_check_branch
      %271 = sbr.rel (0) target = $region41
    $region40: #{class_block_forward.1} parent=1 // pred_region
      %272 = dma.done [#allocation4], 128
    $region41: #{class_block_forward.1} parent=1 // pred_fallthru
      _
    %273 = vsyncpa [#allocation3], 1
    %274 = vsyncpa [#allocation6], 1
    %275 = vsyncpa [#allocation4], 1

</llo_original>
